<compile_context>
chip_gen: v7x
topology: tpu7x:2x2x1
jax: 0.10.0
libtpu: 0.0.40
codegen_flags: <defaults>
</compile_context>

<pallas_src>
import functools

import jax
import jax.numpy as jnp
from jax.experimental import pallas as pl
from jax.experimental.pallas import tpu as pltpu


def _ffn_kernel(x_ref, g_ref, b_ref, wh_ref, wy_ref, bh_ref, by_ref,
                wd_ref, bd_ref, o_ref, xn_ref, acc_ref, *, eps):
    j = pl.program_id(1)

    # First hidden tile for this row tile: compute LayerNorm once, cache it in
    # scratch (in the matmul dtype), and zero the f32 accumulator.
    @pl.when(j == 0)
    def _():
        x = x_ref[...].astype(jnp.float32)
        mu = jnp.mean(x, axis=-1, keepdims=True)
        xc = x - mu
        var = jnp.mean(xc * xc, axis=-1, keepdims=True)
        xn = xc * jax.lax.rsqrt(var + eps)
        xn = xn * g_ref[...].astype(jnp.float32) + b_ref[...].astype(jnp.float32)
        xn_ref[...] = xn.astype(xn_ref.dtype)
        acc_ref[...] = jnp.zeros_like(acc_ref)

    xn = xn_ref[...]
    # Up projection, split halves so h / y come straight out of the MXU.
    h = jnp.dot(xn, wh_ref[...], preferred_element_type=jnp.float32)
    h = h + bh_ref[...].astype(jnp.float32)
    y = jnp.dot(xn, wy_ref[...], preferred_element_type=jnp.float32)
    y = y + by_ref[...].astype(jnp.float32)

    # SiLU gate: h * silu(y).
    # drop_1 / drop_2: nn.Dropout(0.1) is identity in eval mode.
    # TODO(synk): training-mode dropout (stochastic masks) not implemented.
    gated = (h * (y * jax.nn.sigmoid(y))).astype(wd_ref.dtype)

    # Down projection: accumulate over hidden tiles in f32.
    acc_ref[...] += jnp.dot(gated, wd_ref[...], preferred_element_type=jnp.float32)

    @pl.when(j == pl.num_programs(1) - 1)
    def _():
        o_ref[...] = (acc_ref[...] + bd_ref[...].astype(jnp.float32)).astype(o_ref.dtype)


def feedforward_pallas(x, params, *, tile_m=256, tile_h=512, eps=1e-5,
                       matmul_dtype=jnp.bfloat16,
                       vmem_limit_bytes=64 * 1024 * 1024):
    """x: (B, T, D). params as produced by init_params. Returns (B, T, D)."""
    B, T, D = x.shape
    gamma, beta, w_up, b_up, w_down, b_down = params
    H2 = w_up.shape[1]
    assert H2 % 2 == 0
    H = H2 // 2
    assert w_down.shape == (H, D)

    N = B * T
    x2 = x.reshape(N, D)

    tile_m = min(tile_m, N)
    tile_h = min(tile_h, H)
    sublane = 8 * (4 // jnp.dtype(matmul_dtype).itemsize)  # 8 for f32, 16 for bf16
    assert N % tile_m == 0, "row count must divide the row tile"
    assert H % tile_h == 0, "hidden dim must divide the hidden tile"
    assert D % 128 == 0, "dim must be a multiple of 128 (lane-dense stores)"
    assert tile_h % 128 == 0, "hidden tile must be a multiple of 128"
    assert tile_m % sublane == 0, "row tile must match the dtype sublane tile"

    # Split the up projection weights/bias into the two halves (h / y) and cast
    # weights to the MXU dtype (bf16 by default); biases stay f32 and are added
    # after the f32-accumulated dot.
    w_h = w_up[:, :H].astype(matmul_dtype)
    w_y = w_up[:, H:].astype(matmul_dtype)
    b_h = b_up[:H].reshape(1, H)
    b_y = b_up[H:].reshape(1, H)
    w_d = w_down.astype(matmul_dtype)

    gamma2 = gamma.reshape(1, D)
    beta2 = beta.reshape(1, D)
    b_down2 = b_down.reshape(1, D)

    grid = (N // tile_m, H // tile_h)
    kernel = functools.partial(_ffn_kernel, eps=eps)

    out2 = pl.pallas_call(
        kernel,
        out_shape=jax.ShapeDtypeStruct((N, D), x.dtype),
        grid_spec=pltpu.PrefetchScalarGridSpec(
            num_scalar_prefetch=0,
            grid=grid,
            in_specs=[
                pl.BlockSpec((tile_m, D), lambda i, j: (i, 0)),   # x rows
                pl.BlockSpec((1, D), lambda i, j: (0, 0)),        # ln gamma
                pl.BlockSpec((1, D), lambda i, j: (0, 0)),        # ln beta
                pl.BlockSpec((D, tile_h), lambda i, j: (0, j)),   # up weight, h half
                pl.BlockSpec((D, tile_h), lambda i, j: (0, j)),   # up weight, y half
                pl.BlockSpec((1, tile_h), lambda i, j: (0, j)),   # up bias, h half
                pl.BlockSpec((1, tile_h), lambda i, j: (0, j)),   # up bias, y half
                pl.BlockSpec((tile_h, D), lambda i, j: (j, 0)),   # down weight
                pl.BlockSpec((1, D), lambda i, j: (0, 0)),        # down bias
            ],
            out_specs=pl.BlockSpec((tile_m, D), lambda i, j: (i, 0)),
            scratch_shapes=[
                pltpu.VMEM((tile_m, D), matmul_dtype),   # cached LayerNorm output
                pltpu.VMEM((tile_m, D), jnp.float32),    # down-projection accumulator
            ],
        ),
        compiler_params=pltpu.CompilerParams(
            dimension_semantics=("parallel", "arbitrary"),
            vmem_limit_bytes=vmem_limit_bytes,
        ),
    )(x2, gamma2, beta2, w_h, w_y, b_h, b_y, w_d, b_down2)

    return out2.reshape(B, T, D)


def init_params(key, dim, hidden_dim, *, zero_down=True):
    """Parameter init mirroring FeedForward.__init__ shapes.

    zero_down=True matches the module's zero_init(down); zero_down=False uses
    random down weights so correctness tests exercise the full path.
    """
    k_up_w, k_up_b, k_dn_w, k_dn_b = jax.random.split(key, 4)
    # LayerNorm((dim,)): weight=1, bias=0
    gamma = jnp.ones((dim,), jnp.float32)
    beta = jnp.zeros((dim,), jnp.float32)
    # up = nn.Linear(dim, hidden_dim * 2); stored here as (in, out)
    bound_up = 1.0 / (dim ** 0.5)
    w_up = jax.random.uniform(k_up_w, (dim, hidden_dim * 2), jnp.float32,
                              -bound_up, bound_up)
    b_up = jax.random.uniform(k_up_b, (hidden_dim * 2,), jnp.float32,
                              -bound_up, bound_up)
    if zero_down:
        # down = zero_init(nn.Linear(hidden_dim, dim)) -> all zeros
        w_down = jnp.zeros((hidden_dim, dim), jnp.float32)
        b_down = jnp.zeros((dim,), jnp.float32)
    else:
        bound_dn = 1.0 / (hidden_dim ** 0.5)
        w_down = jax.random.uniform(k_dn_w, (hidden_dim, dim), jnp.float32,
                                    -bound_dn, bound_dn)
        b_down = jax.random.uniform(k_dn_b, (dim,), jnp.float32,
                                    -bound_dn, bound_dn)
    return gamma, beta, w_up, b_up, w_down, b_down


def feedforward_ref(x, params, eps=1e-5):
    gamma, beta, w_up, b_up, w_down, b_down = params
    mu = jnp.mean(x, axis=-1, keepdims=True)
    var = jnp.mean((x - mu) ** 2, axis=-1, keepdims=True)
    xn = (x - mu) * jax.lax.rsqrt(var + eps) * gamma + beta
    up = xn @ w_up + b_up
    h, y = jnp.split(up, 2, axis=-1)
    g = h * jax.nn.silu(y)
    return g @ w_down + b_down


if __name__ == "__main__":
    # Small but lane-aligned shapes (D, H multiples of 128) per review.
    B, T, D, HID = 2, 16, 128, 256
    key = jax.random.PRNGKey(0)
    k_x, k_p = jax.random.split(key)
    x = jax.random.normal(k_x, (B, T, D), jnp.float32)

    # Random down-projection so the SiLU gate + second matmul are actually tested.
    params = init_params(k_p, D, HID, zero_down=False)
    ref = feedforward_ref(x, params)

    # Exact-path check (f32 MXU operands), tight tolerance.
    out_f32 = jax.block_until_ready(
        feedforward_pallas(x, params, matmul_dtype=jnp.float32))
    assert out_f32.shape == (B, T, D)
    assert jnp.allclose(out_f32, ref, atol=1e-4, rtol=1e-4)

    # Fast path (bf16 MXU operands, f32 accumulation), loose tolerance.
    out_bf16 = jax.block_until_ready(feedforward_pallas(x, params))
    assert out_bf16.shape == (B, T, D)
    assert jnp.allclose(out_bf16, ref, atol=5e-2, rtol=5e-2)

    # Also exercise the module's actual init (zero-initialized down projection).
    params_zero = init_params(k_p, D, HID, zero_down=True)
    out_zero = jax.block_until_ready(feedforward_pallas(x, params_zero))
    assert jnp.allclose(out_zero, feedforward_ref(x, params_zero),
                        atol=5e-2, rtol=5e-2)

    print("KERNEL_OK")
</pallas_src>

<mosaic_0001>
module attributes {stable_mosaic.version = 11 : i64} {
  func.func @_ffn_kernel(%arg0: i32, %arg1: i32, %arg2: memref<32x128xf32, #tpu.memory_space<vmem>>, %arg3: memref<1x128xf32, #tpu.memory_space<vmem>>, %arg4: memref<1x128xf32, #tpu.memory_space<vmem>>, %arg5: memref<128x256xf32, #tpu.memory_space<vmem>>, %arg6: memref<128x256xf32, #tpu.memory_space<vmem>>, %arg7: memref<1x256xf32, #tpu.memory_space<vmem>>, %arg8: memref<1x256xf32, #tpu.memory_space<vmem>>, %arg9: memref<256x128xf32, #tpu.memory_space<vmem>>, %arg10: memref<1x128xf32, #tpu.memory_space<vmem>>, %arg11: memref<32x128xf32, #tpu.memory_space<vmem>>, %arg12: memref<32x128xf32, #tpu.memory_space<vmem>>, %arg13: memref<32x128xf32, #tpu.memory_space<vmem>>) attributes {dimension_semantics = [#tpu.dimension_semantics<parallel>, #tpu.dimension_semantics<arbitrary>], iteration_bounds = array<i64: 1, 1>, scalar_prefetch = 0 : i64, scratch_operands = 2 : i64, tpu.core_type = #tpu.core_type<tc>, window_params = [{transform_indices = @transform_0, window_bounds = array<i64: 32, 128>}, {pipeline_mode = #tpu.pipeline_mode<synchronous>, transform_indices = @transform_1, window_bounds = array<i64: 1, 128>}, {pipeline_mode = #tpu.pipeline_mode<synchronous>, transform_indices = @transform_2, window_bounds = array<i64: 1, 128>}, {transform_indices = @transform_3, window_bounds = array<i64: 128, 256>}, {transform_indices = @transform_4, window_bounds = array<i64: 128, 256>}, {transform_indices = @transform_5, window_bounds = array<i64: 1, 256>}, {transform_indices = @transform_6, window_bounds = array<i64: 1, 256>}, {transform_indices = @transform_7, window_bounds = array<i64: 256, 128>}, {pipeline_mode = #tpu.pipeline_mode<synchronous>, transform_indices = @transform_8, window_bounds = array<i64: 1, 128>}, {transform_indices = @transform_9, window_bounds = array<i64: 32, 128>}]} {
    %c0_i32 = arith.constant 0 : i32
    %0 = arith.cmpi eq, %arg1, %c0_i32 : i32
    %1 = arith.extui %0 : i1 to i32
    %c0_i32_0 = arith.constant 0 : i32
    %2 = arith.cmpi ne, %1, %c0_i32_0 : i32
    scf.if %2 {
      %c0_21 = arith.constant 0 : index
      %c0_22 = arith.constant 0 : index
      %29 = vector.load %arg2[%c0_21, %c0_22] : memref<32x128xf32, #tpu.memory_space<vmem>>, vector<32x128xf32>
      %cst_23 = arith.constant dense<0.000000e+00> : vector<32xf32>
      %30 = vector.multi_reduction <add>, %29, %cst_23 [1] : vector<32x128xf32> to vector<32xf32>
      %31 = vector.shape_cast %30 : vector<32xf32> to vector<32x1xf32>
      %cst_24 = arith.constant 1.280000e+02 : f32
      %32 = vector.broadcast %cst_24 : f32 to vector<32x1xf32>
      %33 = arith.divf %31, %32 : vector<32x1xf32>
      %34 = vector.broadcast %33 : vector<32x1xf32> to vector<32x128xf32>
      %35 = arith.subf %29, %34 : vector<32x128xf32>
      %36 = arith.mulf %35, %35 : vector<32x128xf32>
      %cst_25 = arith.constant dense<0.000000e+00> : vector<32xf32>
      %37 = vector.multi_reduction <add>, %36, %cst_25 [1] : vector<32x128xf32> to vector<32xf32>
      %38 = vector.shape_cast %37 : vector<32xf32> to vector<32x1xf32>
      %cst_26 = arith.constant 1.280000e+02 : f32
      %39 = vector.broadcast %cst_26 : f32 to vector<32x1xf32>
      %40 = arith.divf %38, %39 : vector<32x1xf32>
      %cst_27 = arith.constant 9.99999974E-6 : f32
      %41 = vector.broadcast %cst_27 : f32 to vector<32x1xf32>
      %42 = arith.addf %40, %41 : vector<32x1xf32>
      %43 = math.rsqrt %42 : vector<32x1xf32>
      %44 = vector.broadcast %43 : vector<32x1xf32> to vector<32x128xf32>
      %45 = arith.mulf %35, %44 : vector<32x128xf32>
      %c0_28 = arith.constant 0 : index
      %c0_29 = arith.constant 0 : index
      %46 = vector.load %arg3[%c0_28, %c0_29] : memref<1x128xf32, #tpu.memory_space<vmem>>, vector<1x128xf32>
      %47 = vector.broadcast %46 : vector<1x128xf32> to vector<32x128xf32>
      %48 = arith.mulf %45, %47 : vector<32x128xf32>
      %c0_30 = arith.constant 0 : index
      %c0_31 = arith.constant 0 : index
      %49 = vector.load %arg4[%c0_30, %c0_31] : memref<1x128xf32, #tpu.memory_space<vmem>>, vector<1x128xf32>
      %50 = vector.broadcast %49 : vector<1x128xf32> to vector<32x128xf32>
      %51 = arith.addf %48, %50 : vector<32x128xf32>
      %c0_32 = arith.constant 0 : index
      %c0_33 = arith.constant 0 : index
      %52 = vector.load %arg12[%c0_32, %c0_33] : memref<32x128xf32, #tpu.memory_space<vmem>>, vector<32x128xf32>
      tpu.vector_store %arg12[%c0_32, %c0_33], %51 {strides = array<i32>} : memref<32x128xf32, #tpu.memory_space<vmem>>, vector<32x128xf32>,
      %cst_34 = arith.constant 0.000000e+00 : f32
      %53 = vector.broadcast %cst_34 : f32 to vector<32x128xf32>
      %c0_35 = arith.constant 0 : index
      %c0_36 = arith.constant 0 : index
      %54 = vector.load %arg13[%c0_35, %c0_36] : memref<32x128xf32, #tpu.memory_space<vmem>>, vector<32x128xf32>
      tpu.vector_store %arg13[%c0_35, %c0_36], %53 {strides = array<i32>} : memref<32x128xf32, #tpu.memory_space<vmem>>, vector<32x128xf32>,
    } else {
    }
    %c0 = arith.constant 0 : index
    %c0_1 = arith.constant 0 : index
    %3 = vector.load %arg12[%c0, %c0_1] : memref<32x128xf32, #tpu.memory_space<vmem>>, vector<32x128xf32>
    %c0_2 = arith.constant 0 : index
    %c0_3 = arith.constant 0 : index
    %4 = vector.load %arg5[%c0_2, %c0_3] : memref<128x256xf32, #tpu.memory_space<vmem>>, vector<128x256xf32>
    %cst = arith.constant dense<0.000000e+00> : vector<32x256xf32>
    %5 = tpu.matmul %3, %4, %cst {dimension_numbers = #tpu.dot_dimension_numbers<[1], [0], [0], [1], [0, 0, 1, 1], [], []>} : vector<32x128xf32>, vector<128x256xf32>, vector<32x256xf32> -> vector<32x256xf32>
    %c0_4 = arith.constant 0 : index
    %c0_5 = arith.constant 0 : index
    %6 = vector.load %arg7[%c0_4, %c0_5] : memref<1x256xf32, #tpu.memory_space<vmem>>, vector<1x256xf32>
    %7 = vector.broadcast %6 : vector<1x256xf32> to vector<32x256xf32>
    %8 = arith.addf %5, %7 : vector<32x256xf32>
    %c0_6 = arith.constant 0 : index
    %c0_7 = arith.constant 0 : index
    %9 = vector.load %arg6[%c0_6, %c0_7] : memref<128x256xf32, #tpu.memory_space<vmem>>, vector<128x256xf32>
    %cst_8 = arith.constant dense<0.000000e+00> : vector<32x256xf32>
    %10 = tpu.matmul %3, %9, %cst_8 {dimension_numbers = #tpu.dot_dimension_numbers<[1], [0], [0], [1], [0, 0, 1, 1], [], []>} : vector<32x128xf32>, vector<128x256xf32>, vector<32x256xf32> -> vector<32x256xf32>
    %c0_9 = arith.constant 0 : index
    %c0_10 = arith.constant 0 : index
    %11 = vector.load %arg8[%c0_9, %c0_10] : memref<1x256xf32, #tpu.memory_space<vmem>>, vector<1x256xf32>
    %12 = vector.broadcast %11 : vector<1x256xf32> to vector<32x256xf32>
    %13 = arith.addf %10, %12 : vector<32x256xf32>
    %14 = arith.negf %13 : vector<32x256xf32>
    %15 = math.exp %14 : vector<32x256xf32>
    %cst_11 = arith.constant 1.000000e+00 : f32
    %16 = vector.broadcast %cst_11 : f32 to vector<32x256xf32>
    %17 = arith.addf %16, %15 : vector<32x256xf32>
    %18 = arith.divf %16, %17 : vector<32x256xf32>
    %19 = arith.mulf %13, %18 : vector<32x256xf32>
    %20 = arith.mulf %8, %19 : vector<32x256xf32>
    %c0_12 = arith.constant 0 : index
    %c0_13 = arith.constant 0 : index
    %21 = vector.load %arg13[%c0_12, %c0_13] : memref<32x128xf32, #tpu.memory_space<vmem>>, vector<32x128xf32>
    %c0_14 = arith.constant 0 : index
    %c0_15 = arith.constant 0 : index
    %22 = vector.load %arg9[%c0_14, %c0_15] : memref<256x128xf32, #tpu.memory_space<vmem>>, vector<256x128xf32>
    %cst_16 = arith.constant dense<0.000000e+00> : vector<32x128xf32>
    %23 = tpu.matmul %20, %22, %cst_16 {dimension_numbers = #tpu.dot_dimension_numbers<[1], [0], [0], [1], [0, 0, 1, 1], [], []>} : vector<32x256xf32>, vector<256x128xf32>, vector<32x128xf32> -> vector<32x128xf32>
    %24 = arith.addf %21, %23 : vector<32x128xf32>
    %c0_17 = arith.constant 0 : index
    %c0_18 = arith.constant 0 : index
    %25 = vector.load %arg13[%c0_17, %c0_18] : memref<32x128xf32, #tpu.memory_space<vmem>>, vector<32x128xf32>
    tpu.vector_store %arg13[%c0_17, %c0_18], %24 {strides = array<i32>} : memref<32x128xf32, #tpu.memory_space<vmem>>, vector<32x128xf32>,
    %c0_i32_19 = arith.constant 0 : i32
    %26 = arith.cmpi eq, %arg1, %c0_i32_19 : i32
    %27 = arith.extui %26 : i1 to i32
    %c0_i32_20 = arith.constant 0 : i32
    %28 = arith.cmpi ne, %27, %c0_i32_20 : i32
    scf.if %28 {
      %c0_21 = arith.constant 0 : index
      %c0_22 = arith.constant 0 : index
      %29 = vector.load %arg13[%c0_21, %c0_22] : memref<32x128xf32, #tpu.memory_space<vmem>>, vector<32x128xf32>
      %c0_23 = arith.constant 0 : index
      %c0_24 = arith.constant 0 : index
      %30 = vector.load %arg10[%c0_23, %c0_24] : memref<1x128xf32, #tpu.memory_space<vmem>>, vector<1x128xf32>
      %31 = vector.broadcast %30 : vector<1x128xf32> to vector<32x128xf32>
      %32 = arith.addf %29, %31 : vector<32x128xf32>
      %c0_25 = arith.constant 0 : index
      %c0_26 = arith.constant 0 : index
      %33 = vector.load %arg11[%c0_25, %c0_26] : memref<32x128xf32, #tpu.memory_space<vmem>>, vector<32x128xf32>
      tpu.vector_store %arg11[%c0_25, %c0_26], %32 {strides = array<i32>} : memref<32x128xf32, #tpu.memory_space<vmem>>, vector<32x128xf32>,
    } else {
    }
    return
  }
  func.func @transform_0(%arg0: i32, %arg1: i32) -> (i32, i32) {
    %c0_i32 = arith.constant 0 : i32
    %c0_i32_0 = arith.constant 0 : i32
    return %arg0, %c0_i32 : i32, i32
  }
  func.func @transform_1(%arg0: i32, %arg1: i32) -> (i32, i32) {
    %c0_i32 = arith.constant 0 : i32
    %c0_i32_0 = arith.constant 0 : i32
    %c0_i32_1 = arith.constant 0 : i32
    return %c0_i32, %c0_i32_0 : i32, i32
  }
  func.func @transform_2(%arg0: i32, %arg1: i32) -> (i32, i32) {
    %c0_i32 = arith.constant 0 : i32
    %c0_i32_0 = arith.constant 0 : i32
    %c0_i32_1 = arith.constant 0 : i32
    return %c0_i32, %c0_i32_0 : i32, i32
  }
  func.func @transform_3(%arg0: i32, %arg1: i32) -> (i32, i32) {
    %c0_i32 = arith.constant 0 : i32
    %c0_i32_0 = arith.constant 0 : i32
    return %c0_i32, %arg1 : i32, i32
  }
  func.func @transform_4(%arg0: i32, %arg1: i32) -> (i32, i32) {
    %c0_i32 = arith.constant 0 : i32
    %c0_i32_0 = arith.constant 0 : i32
    return %c0_i32, %arg1 : i32, i32
  }
  func.func @transform_5(%arg0: i32, %arg1: i32) -> (i32, i32) {
    %c0_i32 = arith.constant 0 : i32
    %c0_i32_0 = arith.constant 0 : i32
    return %c0_i32, %arg1 : i32, i32
  }
  func.func @transform_6(%arg0: i32, %arg1: i32) -> (i32, i32) {
    %c0_i32 = arith.constant 0 : i32
    %c0_i32_0 = arith.constant 0 : i32
    return %c0_i32, %arg1 : i32, i32
  }
  func.func @transform_7(%arg0: i32, %arg1: i32) -> (i32, i32) {
    %c0_i32 = arith.constant 0 : i32
    %c0_i32_0 = arith.constant 0 : i32
    return %arg1, %c0_i32 : i32, i32
  }
  func.func @transform_8(%arg0: i32, %arg1: i32) -> (i32, i32) {
    %c0_i32 = arith.constant 0 : i32
    %c0_i32_0 = arith.constant 0 : i32
    %c0_i32_1 = arith.constant 0 : i32
    return %c0_i32, %c0_i32_0 : i32, i32
  }
  func.func @transform_9(%arg0: i32, %arg1: i32) -> (i32, i32) {
    %c0_i32 = arith.constant 0 : i32
    %c0_i32_0 = arith.constant 0 : i32
    return %arg0, %c0_i32 : i32, i32
  }
}

</mosaic_0001>

<llo_original>
// kernel: tpu_custom_call.1
$region0: #{tpu_custom_call.1}
  #allocation0 [shape = 'u32[]', space=smem, size = 0x4, offset = 0x4, fixed_abs, tag = 'smem constant byte address 0x4 - core index']
  #allocation1 [shape = 'u32[144,128]{1,0:T(1,128)}', space=vmem, size = 0x12000, scoped, tag = 'internal scratch']
  #allocation2 [shape = 'f32[32,128]{1,0:T(8,128)}', space=vmem, size = 0x4000, scoped, tag = 'scratch operand']
  #allocation3 [shape = 'f32[32,128]{1,0:T(8,128)}', space=vmem, size = 0x4000, scoped, tag = 'scratch operand']
  %s0 = inlined_call_operand.hbm [shape: f32[32,128], index: 0, kind: input, shape index: {}]
  %s1 = inlined_call_operand.hbm [shape: f32[1,128], index: 1, kind: input, shape index: {}]
  %s2 = inlined_call_operand.hbm [shape: f32[1,128], index: 2, kind: input, shape index: {}]
  %s3 = inlined_call_operand.hbm [shape: f32[128,256], index: 3, kind: input, shape index: {}]
  %s4 = inlined_call_operand.hbm [shape: f32[128,256], index: 4, kind: input, shape index: {}]
  %s5 = inlined_call_operand.hbm [shape: f32[1,256], index: 5, kind: input, shape index: {}]
  %s6 = inlined_call_operand.hbm [shape: f32[1,256], index: 6, kind: input, shape index: {}]
  %s7 = inlined_call_operand.hbm [shape: f32[256,128], index: 7, kind: input, shape index: {}]
  %s8 = inlined_call_operand.hbm [shape: f32[1,128], index: 8, kind: input, shape index: {}]
  %s9 = inlined_call_operand.hbm [shape: f32[32,128], index: 9, kind: output, shape index: {}]
  %s10 = sld [smem:[#allocation0]]
  $region90: #{tpu_custom_call.1} parent=0
    _
  %s12 = ssub.s32 1, %s10
  %s13 = scalar_select 0, %s12, %s10
  $region1: #{tpu_custom_call.1} parent=0
    #allocation4 [shape = 'u8[16384]{0}', space=vmem, size = 0x4000, scoped, tag = 'input window, operand 0, single buffered']
    #allocation5 [shape = 's32[1]{0}', space=sflag, size = 0x4, scoped, tag = 'scoped memory for tpu_custom_call.1']
    #allocation6 [shape = 's32[1]{0}', space=sflag, size = 0x4, scoped, tag = 'scoped memory for tpu_custom_call.1']
    #allocation7 [shape = 'u8[512]{0}', space=vmem, size = 0x400, scoped, tag = 'input window, operand 1, single buffered']
    #allocation8 [shape = 's32[1]{0}', space=sflag, size = 0x4, scoped, tag = 'scoped memory for tpu_custom_call.1']
    #allocation9 [shape = 'u8[512]{0}', space=vmem, size = 0x400, scoped, tag = 'input window, operand 2, single buffered']
    #allocation10 [shape = 'u8[131072]{0}', space=vmem, size = 0x20000, scoped, tag = 'input window, operand 3, single buffered']
    #allocation11 [shape = 's32[1]{0}', space=sflag, size = 0x4, scoped, tag = 'scoped memory for tpu_custom_call.1']
    #allocation12 [shape = 'u8[131072]{0}', space=vmem, size = 0x20000, scoped, tag = 'input window, operand 4, single buffered']
    #allocation13 [shape = 'u8[1024]{0}', space=vmem, size = 0x400, scoped, tag = 'input window, operand 5, single buffered']
    #allocation14 [shape = 's32[1]{0}', space=sflag, size = 0x4, scoped, tag = 'scoped memory for tpu_custom_call.1']
    #allocation15 [shape = 'u8[1024]{0}', space=vmem, size = 0x400, scoped, tag = 'input window, operand 6, single buffered']
    #allocation16 [shape = 'u8[131072]{0}', space=vmem, size = 0x20000, scoped, tag = 'input window, operand 7, single buffered']
    #allocation17 [shape = 's32[1]{0}', space=sflag, size = 0x4, scoped, tag = 'scoped memory for tpu_custom_call.1']
    #allocation18 [shape = 'u8[512]{0}', space=vmem, size = 0x400, scoped, tag = 'input window, operand 8, single buffered']
    #allocation19 [shape = 'u8[16384]{0}', space=vmem, size = 0x4000, scoped, tag = 'output window, operand 0, single buffered']
    %14 = vsyncpa [#allocation5], 0
    %15 = vsyncpa [#allocation8], 0
    %16 = vsyncpa [#allocation11], 0
    %17 = vsyncpa [#allocation14], 0
    %18 = vsyncpa [#allocation17], 0
    %19 = vsyncpa [#allocation6], 0
    // Predicated region
    $region2: #{tpu_custom_call.1} parent=1 // pred_check
      _
    $region3: #{tpu_custom_call.1} parent=1 // pred_check_branch
      %21 = sbr.rel (0) target = $region5
    $region4: #{tpu_custom_call.1} parent=1 // pred_region
      %s23 = ssub.s32 512, 512
      %24 = vsyncadd [#allocation5], %s23
      %s25 = sshll.u32 [#allocation4], 4
      %s26 = int_to_ptr.vmem [resolvable:$true] %s25
      %31 = dma.hbm_to_vmem [thread:$0]  %s0, 512, %s26, [#allocation5], 128, 128, 8
    $region5: #{tpu_custom_call.1} parent=1 // pred_fallthru
      _
    // Predicated region
    $region6: #{tpu_custom_call.1} parent=1 // pred_check
      _
    $region7: #{tpu_custom_call.1} parent=1 // pred_check_branch
      %33 = sbr.rel (0) target = $region9
    $region8: #{tpu_custom_call.1} parent=1 // pred_region
      %s35 = ssub.s32 16, 16
      %36 = vsyncadd [#allocation8], %s35
      %s38 = sshll.u32 [#allocation7], 4
      %s39 = int_to_ptr.vmem [resolvable:$true] %s38
      %41 = dma.hbm_to_vmem [thread:$0]  %s1, 16, %s39, [#allocation8]
    $region9: #{tpu_custom_call.1} parent=1 // pred_fallthru
      _
    // Predicated region
    $region10: #{tpu_custom_call.1} parent=1 // pred_check
      _
    $region11: #{tpu_custom_call.1} parent=1 // pred_check_branch
      %43 = sbr.rel (0) target = $region13
    $region12: #{tpu_custom_call.1} parent=1 // pred_region
      %s45 = ssub.s32 16, 16
      %46 = vsyncadd [#allocation8], %s45
      %s48 = sshll.u32 [#allocation9], 4
      %s49 = int_to_ptr.vmem [resolvable:$true] %s48
      %51 = dma.hbm_to_vmem [thread:$0]  %s2, 16, %s49, [#allocation8]
    $region13: #{tpu_custom_call.1} parent=1 // pred_fallthru
      _
    // Predicated region
    $region14: #{tpu_custom_call.1} parent=1 // pred_check
      _
    $region15: #{tpu_custom_call.1} parent=1 // pred_check_branch
      %53 = sbr.rel (0) target = $region17
    $region16: #{tpu_custom_call.1} parent=1 // pred_region
      %s55 = ssub.s32 4096, 4096
      %56 = vsyncadd [#allocation11], %s55
      %s57 = sshll.u32 [#allocation10], 4
      %s58 = int_to_ptr.vmem [resolvable:$true] %s57
      %63 = dma.hbm_to_vmem [thread:$0]  %s3, 4096, %s58, [#allocation11], 256, 256, 16
    $region17: #{tpu_custom_call.1} parent=1 // pred_fallthru
      _
    // Predicated region
    $region18: #{tpu_custom_call.1} parent=1 // pred_check
      _
    $region19: #{tpu_custom_call.1} parent=1 // pred_check_branch
      %65 = sbr.rel (0) target = $region21
    $region20: #{tpu_custom_call.1} parent=1 // pred_region
      %s67 = ssub.s32 4096, 4096
      %68 = vsyncadd [#allocation11], %s67
      %s69 = sshll.u32 [#allocation12], 4
      %s70 = int_to_ptr.vmem [resolvable:$true] %s69
      %75 = dma.hbm_to_vmem [thread:$0]  %s4, 4096, %s70, [#allocation11], 256, 256, 16
    $region21: #{tpu_custom_call.1} parent=1 // pred_fallthru
      _
    // Predicated region
    $region22: #{tpu_custom_call.1} parent=1 // pred_check
      _
    $region23: #{tpu_custom_call.1} parent=1 // pred_check_branch
      %77 = sbr.rel (0) target = $region25
    $region24: #{tpu_custom_call.1} parent=1 // pred_region
      %s79 = ssub.s32 32, 32
      %80 = vsyncadd [#allocation14], %s79
      %s82 = sshll.u32 [#allocation13], 4
      %s83 = int_to_ptr.vmem [resolvable:$true] %s82
      %85 = dma.hbm_to_vmem [thread:$0]  %s5, 32, %s83, [#allocation14]
    $region25: #{tpu_custom_call.1} parent=1 // pred_fallthru
      _
    // Predicated region
    $region26: #{tpu_custom_call.1} parent=1 // pred_check
      _
    $region27: #{tpu_custom_call.1} parent=1 // pred_check_branch
      %87 = sbr.rel (0) target = $region29
    $region28: #{tpu_custom_call.1} parent=1 // pred_region
      %s89 = ssub.s32 32, 32
      %90 = vsyncadd [#allocation14], %s89
      %s92 = sshll.u32 [#allocation15], 4
      %s93 = int_to_ptr.vmem [resolvable:$true] %s92
      %95 = dma.hbm_to_vmem [thread:$0]  %s6, 32, %s93, [#allocation14]
    $region29: #{tpu_custom_call.1} parent=1 // pred_fallthru
      _
    // Predicated region
    $region30: #{tpu_custom_call.1} parent=1 // pred_check
      _
    $region31: #{tpu_custom_call.1} parent=1 // pred_check_branch
      %97 = sbr.rel (0) target = $region33
    $region32: #{tpu_custom_call.1} parent=1 // pred_region
      %s99 = ssub.s32 4096, 4096
      %100 = vsyncadd [#allocation17], %s99
      %s101 = sshll.u32 [#allocation16], 4
      %s102 = int_to_ptr.vmem [resolvable:$true] %s101
      %107 = dma.hbm_to_vmem [thread:$0]  %s7, 4096, %s102, [#allocation17], 128, 128, 8
    $region33: #{tpu_custom_call.1} parent=1 // pred_fallthru
      _
    // Predicated region
    $region34: #{tpu_custom_call.1} parent=1 // pred_check
      _
    $region35: #{tpu_custom_call.1} parent=1 // pred_check_branch
      %109 = sbr.rel (0) target = $region37
    $region36: #{tpu_custom_call.1} parent=1 // pred_region
      %s111 = ssub.s32 16, 16
      %112 = vsyncadd [#allocation17], %s111
      %s114 = sshll.u32 [#allocation18], 4
      %s115 = int_to_ptr.vmem [resolvable:$true] %s114
      %117 = dma.hbm_to_vmem [thread:$0]  %s8, 16, %s115, [#allocation17]
    $region37: #{tpu_custom_call.1} parent=1 // pred_fallthru
      _
    // Predicated region
    $region38: #{tpu_custom_call.1} parent=1 // pred_check
      _
    $region39: #{tpu_custom_call.1} parent=1 // pred_check_branch
      %119 = sbr.rel (0) target = $region41
    $region40: #{tpu_custom_call.1} parent=1 // pred_region
      %120 = dma.done [#allocation5], 512
    $region41: #{tpu_custom_call.1} parent=1 // pred_fallthru
      _
    // Predicated region
    $region42: #{tpu_custom_call.1} parent=1 // pred_check
      _
    $region43: #{tpu_custom_call.1} parent=1 // pred_check_branch
      %122 = sbr.rel (0) target = $region45
    $region44: #{tpu_custom_call.1} parent=1 // pred_region
      %123 = dma.done [#allocation8], 16
    $region45: #{tpu_custom_call.1} parent=1 // pred_fallthru
      _
    // Predicated region
    $region46: #{tpu_custom_call.1} parent=1 // pred_check
      _
    $region47: #{tpu_custom_call.1} parent=1 // pred_check_branch
      %125 = sbr.rel (0) target = $region49
    $region48: #{tpu_custom_call.1} parent=1 // pred_region
      %126 = dma.done [#allocation8], 16
    $region49: #{tpu_custom_call.1} parent=1 // pred_fallthru
      _
    // Predicated region
    $region50: #{tpu_custom_call.1} parent=1 // pred_check
      _
    $region51: #{tpu_custom_call.1} parent=1 // pred_check_branch
      %128 = sbr.rel (0) target = $region53
    $region52: #{tpu_custom_call.1} parent=1 // pred_region
      %129 = dma.done [#allocation11], 4096
    $region53: #{tpu_custom_call.1} parent=1 // pred_fallthru
      _
    // Predicated region
    $region54: #{tpu_custom_call.1} parent=1 // pred_check
      _
    $region55: #{tpu_custom_call.1} parent=1 // pred_check_branch
      %131 = sbr.rel (0) target = $region57
    $region56: #{tpu_custom_call.1} parent=1 // pred_region
      %132 = dma.done [#allocation11], 4096
    $region57: #{tpu_custom_call.1} parent=1 // pred_fallthru
      _
    // Predicated region
    $region58: #{tpu_custom_call.1} parent=1 // pred_check
      _
    $region59: #{tpu_custom_call.1} parent=1 // pred_check_branch
      %134 = sbr.rel (0) target = $region61
    $region60: #{tpu_custom_call.1} parent=1 // pred_region
      %135 = dma.done [#allocation14], 32
    $region61: #{tpu_custom_call.1} parent=1 // pred_fallthru
      _
    // Predicated region
    $region62: #{tpu_custom_call.1} parent=1 // pred_check
      _
    $region63: #{tpu_custom_call.1} parent=1 // pred_check_branch
      %137 = sbr.rel (0) target = $region65
    $region64: #{tpu_custom_call.1} parent=1 // pred_region
      %138 = dma.done [#allocation14], 32
    $region65: #{tpu_custom_call.1} parent=1 // pred_fallthru
      _
    // Predicated region
    $region66: #{tpu_custom_call.1} parent=1 // pred_check
      _
    $region67: #{tpu_custom_call.1} parent=1 // pred_check_branch
      %140 = sbr.rel (0) target = $region69
    $region68: #{tpu_custom_call.1} parent=1 // pred_region
      %141 = dma.done [#allocation17], 4096
    $region69: #{tpu_custom_call.1} parent=1 // pred_fallthru
      _
    // Predicated region
    $region70: #{tpu_custom_call.1} parent=1 // pred_check
      _
    $region71: #{tpu_custom_call.1} parent=1 // pred_check_branch
      %143 = sbr.rel (0) target = $region73
    $region72: #{tpu_custom_call.1} parent=1 // pred_region
      %144 = dma.done [#allocation17], 16
    $region73: #{tpu_custom_call.1} parent=1 // pred_fallthru
      _
    %p145 = scmp.eq.s32.totalorder 0, 0
    // Predicated region
    $region74: #{tpu_custom_call.1} parent=1 // pred_check
      %p146 = pneg %p145
    $region75: #{tpu_custom_call.1} parent=1 // pred_check_branch
      %148 = sbr.rel (%p146) target = $region77
    $region76: #{tpu_custom_call.1} parent=1 // pred_region
      %v149 = vld [vmem:[#allocation4] sm:$0xff]
      %v150 = vld [vmem:[#allocation4 + $0x8] sm:$0xff]
      %v151 = vld [vmem:[#allocation4 + $0x10] sm:$0xff]
      %v152 = vld [vmem:[#allocation4 + $0x18] sm:$0xff]
      %153 = vadd.xlane.f32.xlu0 %v149
      %v154 = vpop.xlane.xlu0 %153
      %155 = vadd.xlane.f32.xlu0 %v150
      %v156 = vpop.xlane.xlu0 %155
      %157 = vadd.xlane.f32.xlu0 %v151
      %v158 = vpop.xlane.xlu0 %157
      %159 = vadd.xlane.f32.xlu0 %v152
      %v160 = vpop.xlane.xlu0 %159
      %v161 = vrcp.pop 128.0
      %v162 = vmul.f32 %v154, %v161
      %v163 = vmul.f32 %v156, %v161
      %v164 = vmul.f32 %v158, %v161
      %v165 = vmul.f32 %v160, %v161
      %v166 = vsub.f32 %v149, %v162
      %v167 = vsub.f32 %v150, %v163
      %v168 = vsub.f32 %v151, %v164
      %v169 = vsub.f32 %v152, %v165
      %v170 = vmul.f32 %v166, %v166
      %v171 = vmul.f32 %v167, %v167
      %v172 = vmul.f32 %v168, %v168
      %v173 = vmul.f32 %v169, %v169
      %174 = vadd.xlane.f32.xlu0 %v170
      %v175 = vpop.xlane.xlu0 %174
      %176 = vadd.xlane.f32.xlu0 %v171
      %v177 = vpop.xlane.xlu0 %176
      %178 = vadd.xlane.f32.xlu0 %v172
      %v179 = vpop.xlane.xlu0 %178
      %180 = vadd.xlane.f32.xlu0 %v173
      %v181 = vpop.xlane.xlu0 %180
      %v182 = vmul.f32 %v175, %v161
      %v183 = vmul.f32 %v177, %v161
      %v184 = vmul.f32 %v179, %v161
      %v185 = vmul.f32 %v181, %v161
      %v186 = vadd.f32 %v182, 1e-05
      %v187 = vadd.f32 %v183, 1e-05
      %v188 = vadd.f32 %v184, 1e-05
      %v189 = vadd.f32 %v185, 1e-05
      %v190 = vrsqrt.pop %v186
      %v191 = vrsqrt.pop %v187
      %v192 = vrsqrt.pop %v188
      %v193 = vrsqrt.pop %v189
      %v194 = vmul.f32 %v166, %v190
      %v195 = vmul.f32 %v167, %v191
      %v196 = vmul.f32 %v168, %v192
      %v197 = vmul.f32 %v169, %v193
      %v198 = vld [vmem:[#allocation7] sm:$0x1]
      %v200 = vlaneseq
      %v201 = vshrl.u32 %v200, 7
      %v202 = vsub.s32 0, %v201
      %v203 = vrot.slane %v198, %v202
      %v205 = vmul.f32 %v194, %v203
      %v206 = vmul.f32 %v195, %v203
      %v207 = vmul.f32 %v196, %v203
      %v208 = vmul.f32 %v197, %v203
      %v209 = vld [vmem:[#allocation9] sm:$0x1]
      %v211 = vlaneseq
      %v212 = vshrl.u32 %v211, 7
      %v213 = vsub.s32 0, %v212
      %v214 = vrot.slane %v209, %v213
      %v216 = vadd.f32 %v205, %v214
      %v217 = vadd.f32 %v206, %v214
      %v218 = vadd.f32 %v207, %v214
      %v219 = vadd.f32 %v208, %v214
      %220 = vst [vmem:[#allocation2] sm:$0xff] %v216
      %221 = vst [vmem:[#allocation2 + $0x8] sm:$0xff] %v217
      %222 = vst [vmem:[#allocation2 + $0x10] sm:$0xff] %v218
      %223 = vst [vmem:[#allocation2 + $0x18] sm:$0xff] %v219
      %224 = vst [vmem:[#allocation3] sm:$0xff] 0.0
      %225 = vst [vmem:[#allocation3 + $0x8] sm:$0xff] 0.0
      %226 = vst [vmem:[#allocation3 + $0x10] sm:$0xff] 0.0
      %227 = vst [vmem:[#allocation3 + $0x18] sm:$0xff] 0.0
    $region77: #{tpu_custom_call.1} parent=1 // pred_fallthru
      _
    %v228 = vld [vmem:[#allocation2] sm:$0xff]
    %v229 = vld [vmem:[#allocation2 + $0x8] sm:$0xff]
    %v230 = vld [vmem:[#allocation2 + $0x10] sm:$0xff]
    %v231 = vld [vmem:[#allocation2 + $0x18] sm:$0xff]
    %v232 = vld [vmem:[#allocation10] sm:$0xff]
    %v233 = vld [vmem:[#allocation10 + $0x8] sm:$0xff]
    %v234 = vld [vmem:[#allocation10 + $0x10] sm:$0xff]
    %v235 = vld [vmem:[#allocation10 + $0x18] sm:$0xff]
    %v236 = vld [vmem:[#allocation10 + $0x20] sm:$0xff]
    %v237 = vld [vmem:[#allocation10 + $0x28] sm:$0xff]
    %v238 = vld [vmem:[#allocation10 + $0x30] sm:$0xff]
    %v239 = vld [vmem:[#allocation10 + $0x38] sm:$0xff]
    %v240 = vld [vmem:[#allocation10 + $0x40] sm:$0xff]
    %v241 = vld [vmem:[#allocation10 + $0x48] sm:$0xff]
    %v242 = vld [vmem:[#allocation10 + $0x50] sm:$0xff]
    %v243 = vld [vmem:[#allocation10 + $0x58] sm:$0xff]
    %v244 = vld [vmem:[#allocation10 + $0x60] sm:$0xff]
    %v245 = vld [vmem:[#allocation10 + $0x68] sm:$0xff]
    %v246 = vld [vmem:[#allocation10 + $0x70] sm:$0xff]
    %v247 = vld [vmem:[#allocation10 + $0x78] sm:$0xff]
    %v248 = vld [vmem:[#allocation10 + $0x80] sm:$0xff]
    %v249 = vld [vmem:[#allocation10 + $0x88] sm:$0xff]
    %v250 = vld [vmem:[#allocation10 + $0x90] sm:$0xff]
    %v251 = vld [vmem:[#allocation10 + $0x98] sm:$0xff]
    %v252 = vld [vmem:[#allocation10 + $0xa0] sm:$0xff]
    %v253 = vld [vmem:[#allocation10 + $0xa8] sm:$0xff]
    %v254 = vld [vmem:[#allocation10 + $0xb0] sm:$0xff]
    %v255 = vld [vmem:[#allocation10 + $0xb8] sm:$0xff]
    %v256 = vld [vmem:[#allocation10 + $0xc0] sm:$0xff]
    %v257 = vld [vmem:[#allocation10 + $0xc8] sm:$0xff]
    %v258 = vld [vmem:[#allocation10 + $0xd0] sm:$0xff]
    %v259 = vld [vmem:[#allocation10 + $0xd8] sm:$0xff]
    %v260 = vld [vmem:[#allocation10 + $0xe0] sm:$0xff]
    %v261 = vld [vmem:[#allocation10 + $0xe8] sm:$0xff]
    %v262 = vld [vmem:[#allocation10 + $0xf0] sm:$0xff]
    %v263 = vld [vmem:[#allocation10 + $0xf8] sm:$0xff]
    %v264 = vld [vmem:[#allocation13] sm:$0x3]
    %v266 = vlaneseq
    %v267 = vshrl.u32 %v266, 7
    %v268 = vsub.s32 0, %v267
    %v269 = vrot.slane %v264, %v268
    %v270 = vlaneseq
    %v271 = vshrl.u32 %v270, 7
    %v272 = vsub.s32 1, %v271
    %v273 = vrot.slane %v264, %v272
    %276 = vmatprep.subr.mxu0 %v233
    %277 = vmatpush1.msra.mxu0 %v232
    %278 = vmatprep.subr.mxu0 %v235
    %279 = vmatpush1.msra.mxu0 %v234
    %280 = vmatprep.subr.mxu0 %v237
    %281 = vmatpush1.msra.mxu0 %v236
    %282 = vmatprep.subr.mxu0 %v239
    %283 = vmatpush1.msra.mxu0 %v238
    %284 = vmatprep.subr.mxu0 %v241
    %285 = vmatpush1.msra.mxu0 %v240
    %286 = vmatprep.subr.mxu0 %v243
    %287 = vmatpush1.msra.mxu0 %v242
    %288 = vmatprep.subr.mxu0 %v245
    %289 = vmatpush1.msra.mxu0 %v244
    %290 = vmatprep.subr.mxu0 %v247
    %291 = vmatpush1.msra.mxu0 %v246
    %292 = vmatprep.subr.mxu0 %v249
    %293 = vmatpush1.msra.mxu0 %v248
    %294 = vmatprep.subr.mxu0 %v251
    %295 = vmatpush1.msra.mxu0 %v250
    %296 = vmatprep.subr.mxu0 %v253
    %297 = vmatpush1.msra.mxu0 %v252
    %298 = vmatprep.subr.mxu0 %v255
    %299 = vmatpush1.msra.mxu0 %v254
    %300 = vmatprep.subr.mxu0 %v257
    %301 = vmatpush1.msra.mxu0 %v256
    %302 = vmatprep.subr.mxu0 %v259
    %303 = vmatpush1.msra.mxu0 %v258
    %304 = vmatprep.subr.mxu0 %v261
    %305 = vmatpush1.msra.mxu0 %v260
    %306 = vmatprep.subr.mxu0 %v263
    %307 = vmatpush1.msra.mxu0 %v262
    %308 = vmatprep.subr.mxu0 0.0
    %309 = vmatpush1.msra.mxu0 0.0
    %310 = vmatprep.subr.mxu0 0.0
    %311 = vmatpush1.msra.mxu0 0.0
    %312 = vmatprep.subr.mxu0 0.0
    %313 = vmatpush1.msra.mxu0 0.0
    %314 = vmatprep.subr.mxu0 0.0
    %315 = vmatpush1.msra.mxu0 0.0
    %316 = vmatprep.subr.mxu0 0.0
    %317 = vmatpush1.msra.mxu0 0.0
    %318 = vmatprep.subr.mxu0 0.0
    %319 = vmatpush1.msra.mxu0 0.0
    %320 = vmatprep.subr.mxu0 0.0
    %321 = vmatpush1.msra.mxu0 0.0
    %322 = vmatprep.subr.mxu0 0.0
    %323 = vmatpush1.msra.mxu0 0.0
    %324 = vmatprep.subr.mxu0 0.0
    %325 = vmatpush1.msra.mxu0 0.0
    %326 = vmatprep.subr.mxu0 0.0
    %327 = vmatpush1.msra.mxu0 0.0
    %328 = vmatprep.subr.mxu0 0.0
    %329 = vmatpush1.msra.mxu0 0.0
    %330 = vmatprep.subr.mxu0 0.0
    %331 = vmatpush1.msra.mxu0 0.0
    %332 = vmatprep.subr.mxu0 0.0
    %333 = vmatpush1.msra.mxu0 0.0
    %334 = vmatprep.subr.mxu0 0.0
    %335 = vmatpush1.msra.mxu0 0.0
    %336 = vmatprep.subr.mxu0 0.0
    %337 = vmatpush1.msra.mxu0 0.0
    %338 = vmatprep.subr.mxu0 0.0
    %339 = vmatpush1.msra.mxu0 0.0
    %340 = vmatprep.mubr.f32.mxu0 0.0
    %341 = vmatmul.mubr.f32.gmra.mrb[0].mxu0 %v228
    %v342 = vpop.f32.mrb[0].mxu0
    %v343 = vadd.f32 %v269, %v342
    %v344 = vpop.f32.mrb[0].mxu0
    %v345 = vadd.f32 %v273, %v344
    %346 = vmatprep.mubr.f32.mxu0 0.0
    %347 = vmatmul.mubr.f32.gmra.mrb[0].mxu0 %v229
    %v348 = vpop.f32.mrb[0].mxu0
    %v349 = vadd.f32 %v269, %v348
    %v350 = vpop.f32.mrb[0].mxu0
    %v351 = vadd.f32 %v273, %v350
    %352 = vmatprep.mubr.f32.mxu0 0.0
    %353 = vmatmul.mubr.f32.gmra.mrb[0].mxu0 %v230
    %v354 = vpop.f32.mrb[0].mxu0
    %v355 = vadd.f32 %v269, %v354
    %v356 = vpop.f32.mrb[0].mxu0
    %v357 = vadd.f32 %v273, %v356
    %358 = vmatprep.mubr.f32.mxu0 0.0
    %359 = vmatmul.mubr.f32.gmra.mrb[0].mxu0 %v231
    %v360 = vpop.f32.mrb[0].mxu0
    %v361 = vadd.f32 %v269, %v360
    %v362 = vpop.f32.mrb[0].mxu0
    %v363 = vadd.f32 %v273, %v362
    %364 = vdwg.mxu0
    %v365 = vld [vmem:[#allocation12] sm:$0xff]
    %v366 = vld [vmem:[#allocation12 + $0x8] sm:$0xff]
    %v367 = vld [vmem:[#allocation12 + $0x10] sm:$0xff]
    %v368 = vld [vmem:[#allocation12 + $0x18] sm:$0xff]
    %v369 = vld [vmem:[#allocation12 + $0x20] sm:$0xff]
    %v370 = vld [vmem:[#allocation12 + $0x28] sm:$0xff]
    %v371 = vld [vmem:[#allocation12 + $0x30] sm:$0xff]
    %v372 = vld [vmem:[#allocation12 + $0x38] sm:$0xff]
    %v373 = vld [vmem:[#allocation12 + $0x40] sm:$0xff]
    %v374 = vld [vmem:[#allocation12 + $0x48] sm:$0xff]
    %v375 = vld [vmem:[#allocation12 + $0x50] sm:$0xff]
    %v376 = vld [vmem:[#allocation12 + $0x58] sm:$0xff]
    %v377 = vld [vmem:[#allocation12 + $0x60] sm:$0xff]
    %v378 = vld [vmem:[#allocation12 + $0x68] sm:$0xff]
    %v379 = vld [vmem:[#allocation12 + $0x70] sm:$0xff]
    %v380 = vld [vmem:[#allocation12 + $0x78] sm:$0xff]
    %v381 = vld [vmem:[#allocation12 + $0x80] sm:$0xff]
    %v382 = vld [vmem:[#allocation12 + $0x88] sm:$0xff]
    %v383 = vld [vmem:[#allocation12 + $0x90] sm:$0xff]
    %v384 = vld [vmem:[#allocation12 + $0x98] sm:$0xff]
    %v385 = vld [vmem:[#allocation12 + $0xa0] sm:$0xff]
    %v386 = vld [vmem:[#allocation12 + $0xa8] sm:$0xff]
    %v387 = vld [vmem:[#allocation12 + $0xb0] sm:$0xff]
    %v388 = vld [vmem:[#allocation12 + $0xb8] sm:$0xff]
    %v389 = vld [vmem:[#allocation12 + $0xc0] sm:$0xff]
    %v390 = vld [vmem:[#allocation12 + $0xc8] sm:$0xff]
    %v391 = vld [vmem:[#allocation12 + $0xd0] sm:$0xff]
    %v392 = vld [vmem:[#allocation12 + $0xd8] sm:$0xff]
    %v393 = vld [vmem:[#allocation12 + $0xe0] sm:$0xff]
    %v394 = vld [vmem:[#allocation12 + $0xe8] sm:$0xff]
    %v395 = vld [vmem:[#allocation12 + $0xf0] sm:$0xff]
    %v396 = vld [vmem:[#allocation12 + $0xf8] sm:$0xff]
    %v397 = vld [vmem:[#allocation15] sm:$0x3]
    %v399 = vlaneseq
    %v400 = vshrl.u32 %v399, 7
    %v401 = vsub.s32 0, %v400
    %v402 = vrot.slane %v397, %v401
    %v403 = vlaneseq
    %v404 = vshrl.u32 %v403, 7
    %v405 = vsub.s32 1, %v404
    %v406 = vrot.slane %v397, %v405
    %409 = vmatprep.subr.mxu0 %v366
    %410 = vmatpush1.msra.mxu0 %v365
    %411 = vmatprep.subr.mxu0 %v368
    %412 = vmatpush1.msra.mxu0 %v367
    %413 = vmatprep.subr.mxu0 %v370
    %414 = vmatpush1.msra.mxu0 %v369
    %415 = vmatprep.subr.mxu0 %v372
    %416 = vmatpush1.msra.mxu0 %v371
    %417 = vmatprep.subr.mxu0 %v374
    %418 = vmatpush1.msra.mxu0 %v373
    %419 = vmatprep.subr.mxu0 %v376
    %420 = vmatpush1.msra.mxu0 %v375
    %421 = vmatprep.subr.mxu0 %v378
    %422 = vmatpush1.msra.mxu0 %v377
    %423 = vmatprep.subr.mxu0 %v380
    %424 = vmatpush1.msra.mxu0 %v379
    %425 = vmatprep.subr.mxu0 %v382
    %426 = vmatpush1.msra.mxu0 %v381
    %427 = vmatprep.subr.mxu0 %v384
    %428 = vmatpush1.msra.mxu0 %v383
    %429 = vmatprep.subr.mxu0 %v386
    %430 = vmatpush1.msra.mxu0 %v385
    %431 = vmatprep.subr.mxu0 %v388
    %432 = vmatpush1.msra.mxu0 %v387
    %433 = vmatprep.subr.mxu0 %v390
    %434 = vmatpush1.msra.mxu0 %v389
    %435 = vmatprep.subr.mxu0 %v392
    %436 = vmatpush1.msra.mxu0 %v391
    %437 = vmatprep.subr.mxu0 %v394
    %438 = vmatpush1.msra.mxu0 %v393
    %439 = vmatprep.subr.mxu0 %v396
    %440 = vmatpush1.msra.mxu0 %v395
    %441 = vmatprep.subr.mxu0 0.0
    %442 = vmatpush1.msra.mxu0 0.0
    %443 = vmatprep.subr.mxu0 0.0
    %444 = vmatpush1.msra.mxu0 0.0
    %445 = vmatprep.subr.mxu0 0.0
    %446 = vmatpush1.msra.mxu0 0.0
    %447 = vmatprep.subr.mxu0 0.0
    %448 = vmatpush1.msra.mxu0 0.0
    %449 = vmatprep.subr.mxu0 0.0
    %450 = vmatpush1.msra.mxu0 0.0
    %451 = vmatprep.subr.mxu0 0.0
    %452 = vmatpush1.msra.mxu0 0.0
    %453 = vmatprep.subr.mxu0 0.0
    %454 = vmatpush1.msra.mxu0 0.0
    %455 = vmatprep.subr.mxu0 0.0
    %456 = vmatpush1.msra.mxu0 0.0
    %457 = vmatprep.subr.mxu0 0.0
    %458 = vmatpush1.msra.mxu0 0.0
    %459 = vmatprep.subr.mxu0 0.0
    %460 = vmatpush1.msra.mxu0 0.0
    %461 = vmatprep.subr.mxu0 0.0
    %462 = vmatpush1.msra.mxu0 0.0
    %463 = vmatprep.subr.mxu0 0.0
    %464 = vmatpush1.msra.mxu0 0.0
    %465 = vmatprep.subr.mxu0 0.0
    %466 = vmatpush1.msra.mxu0 0.0
    %467 = vmatprep.subr.mxu0 0.0
    %468 = vmatpush1.msra.mxu0 0.0
    %469 = vmatprep.subr.mxu0 0.0
    %470 = vmatpush1.msra.mxu0 0.0
    %471 = vmatprep.subr.mxu0 0.0
    %472 = vmatpush1.msra.mxu0 0.0
    %473 = vmatprep.mubr.f32.mxu0 0.0
    %474 = vmatmul.mubr.f32.gmra.mrb[0].mxu0 %v228
    %v475 = vpop.f32.mrb[0].mxu0
    %v476 = vadd.f32 %v402, %v475
    %v477 = vpop.f32.mrb[0].mxu0
    %v478 = vadd.f32 %v406, %v477
    %479 = vmatprep.mubr.f32.mxu0 0.0
    %480 = vmatmul.mubr.f32.gmra.mrb[0].mxu0 %v229
    %v481 = vpop.f32.mrb[0].mxu0
    %v482 = vadd.f32 %v402, %v481
    %v483 = vpop.f32.mrb[0].mxu0
    %v484 = vadd.f32 %v406, %v483
    %485 = vmatprep.mubr.f32.mxu0 0.0
    %486 = vmatmul.mubr.f32.gmra.mrb[0].mxu0 %v230
    %v487 = vpop.f32.mrb[0].mxu0
    %v488 = vadd.f32 %v402, %v487
    %v489 = vpop.f32.mrb[0].mxu0
    %v490 = vadd.f32 %v406, %v489
    %491 = vmatprep.mubr.f32.mxu0 0.0
    %492 = vmatmul.mubr.f32.gmra.mrb[0].mxu0 %v231
    %v493 = vpop.f32.mrb[0].mxu0
    %v494 = vadd.f32 %v402, %v493
    %v495 = vpop.f32.mrb[0].mxu0
    %v496 = vadd.f32 %v406, %v495
    %497 = vdwg.mxu0
    %v498 = vxor.u32 %v476, 2147483648
    %v499 = vxor.u32 %v478, 2147483648
    %v500 = vxor.u32 %v482, 2147483648
    %v501 = vxor.u32 %v484, 2147483648
    %v502 = vxor.u32 %v488, 2147483648
    %v503 = vxor.u32 %v490, 2147483648
    %v504 = vxor.u32 %v494, 2147483648
    %v505 = vxor.u32 %v496, 2147483648
    %v506 = vmul.f32 %v498, 1.442695
    %v507 = vpow.pop %v506
    %v508 = vmul.f32 %v499, 1.442695
    %v509 = vpow.pop %v508
    %v510 = vmul.f32 %v500, 1.442695
    %v511 = vpow.pop %v510
    %v512 = vmul.f32 %v501, 1.442695
    %v513 = vpow.pop %v512
    %v514 = vmul.f32 %v502, 1.442695
    %v515 = vpow.pop %v514
    %v516 = vmul.f32 %v503, 1.442695
    %v517 = vpow.pop %v516
    %v518 = vmul.f32 %v504, 1.442695
    %v519 = vpow.pop %v518
    %v520 = vmul.f32 %v505, 1.442695
    %v521 = vpow.pop %v520
    %v522 = vadd.f32 %v507, 1.0
    %v523 = vadd.f32 %v509, 1.0
    %v524 = vadd.f32 %v511, 1.0
    %v525 = vadd.f32 %v513, 1.0
    %v526 = vadd.f32 %v515, 1.0
    %v527 = vadd.f32 %v517, 1.0
    %v528 = vadd.f32 %v519, 1.0
    %v529 = vadd.f32 %v521, 1.0
    %v530 = vrcp.pop %v522
    %v531 = vmul.f32 1.0, %v530
    %v532 = vrcp.pop %v523
    %v533 = vmul.f32 1.0, %v532
    %v534 = vrcp.pop %v524
    %v535 = vmul.f32 1.0, %v534
    %v536 = vrcp.pop %v525
    %v537 = vmul.f32 1.0, %v536
    %v538 = vrcp.pop %v526
    %v539 = vmul.f32 1.0, %v538
    %v540 = vrcp.pop %v527
    %v541 = vmul.f32 1.0, %v540
    %v542 = vrcp.pop %v528
    %v543 = vmul.f32 1.0, %v542
    %v544 = vrcp.pop %v529
    %v545 = vmul.f32 1.0, %v544
    %v546 = vmul.f32 %v476, %v531
    %v547 = vmul.f32 %v478, %v533
    %v548 = vmul.f32 %v482, %v535
    %v549 = vmul.f32 %v484, %v537
    %v550 = vmul.f32 %v488, %v539
    %v551 = vmul.f32 %v490, %v541
    %v552 = vmul.f32 %v494, %v543
    %v553 = vmul.f32 %v496, %v545
    %v554 = vmul.f32 %v343, %v546
    %v555 = vmul.f32 %v345, %v547
    %v556 = vmul.f32 %v349, %v548
    %v557 = vmul.f32 %v351, %v549
    %v558 = vmul.f32 %v355, %v550
    %v559 = vmul.f32 %v357, %v551
    %v560 = vmul.f32 %v361, %v552
    %v561 = vmul.f32 %v363, %v553
    %v562 = vld [vmem:[#allocation3] sm:$0xff]
    %v563 = vld [vmem:[#allocation3 + $0x8] sm:$0xff]
    %v564 = vld [vmem:[#allocation3 + $0x10] sm:$0xff]
    %v565 = vld [vmem:[#allocation3 + $0x18] sm:$0xff]
    %v566 = vld [vmem:[#allocation16] sm:$0xff]
    %v567 = vld [vmem:[#allocation16 + $0x8] sm:$0xff]
    %v568 = vld [vmem:[#allocation16 + $0x10] sm:$0xff]
    %v569 = vld [vmem:[#allocation16 + $0x18] sm:$0xff]
    %v570 = vld [vmem:[#allocation16 + $0x20] sm:$0xff]
    %v571 = vld [vmem:[#allocation16 + $0x28] sm:$0xff]
    %v572 = vld [vmem:[#allocation16 + $0x30] sm:$0xff]
    %v573 = vld [vmem:[#allocation16 + $0x38] sm:$0xff]
    %v574 = vld [vmem:[#allocation16 + $0x40] sm:$0xff]
    %v575 = vld [vmem:[#allocation16 + $0x48] sm:$0xff]
    %v576 = vld [vmem:[#allocation16 + $0x50] sm:$0xff]
    %v577 = vld [vmem:[#allocation16 + $0x58] sm:$0xff]
    %v578 = vld [vmem:[#allocation16 + $0x60] sm:$0xff]
    %v579 = vld [vmem:[#allocation16 + $0x68] sm:$0xff]
    %v580 = vld [vmem:[#allocation16 + $0x70] sm:$0xff]
    %v581 = vld [vmem:[#allocation16 + $0x78] sm:$0xff]
    %v582 = vld [vmem:[#allocation16 + $0x80] sm:$0xff]
    %v583 = vld [vmem:[#allocation16 + $0x88] sm:$0xff]
    %v584 = vld [vmem:[#allocation16 + $0x90] sm:$0xff]
    %v585 = vld [vmem:[#allocation16 + $0x98] sm:$0xff]
    %v586 = vld [vmem:[#allocation16 + $0xa0] sm:$0xff]
    %v587 = vld [vmem:[#allocation16 + $0xa8] sm:$0xff]
    %v588 = vld [vmem:[#allocation16 + $0xb0] sm:$0xff]
    %v589 = vld [vmem:[#allocation16 + $0xb8] sm:$0xff]
    %v590 = vld [vmem:[#allocation16 + $0xc0] sm:$0xff]
    %v591 = vld [vmem:[#allocation16 + $0xc8] sm:$0xff]
    %v592 = vld [vmem:[#allocation16 + $0xd0] sm:$0xff]
    %v593 = vld [vmem:[#allocation16 + $0xd8] sm:$0xff]
    %v594 = vld [vmem:[#allocation16 + $0xe0] sm:$0xff]
    %v595 = vld [vmem:[#allocation16 + $0xe8] sm:$0xff]
    %v596 = vld [vmem:[#allocation16 + $0xf0] sm:$0xff]
    %v597 = vld [vmem:[#allocation16 + $0xf8] sm:$0xff]
    %598 = vmatprep.subr.mxu0 0.0
    %599 = vmatpush1.msra.mxu0 %v566
    %600 = vmatprep.subr.mxu0 0.0
    %601 = vmatpush1.msra.mxu0 %v567
    %602 = vmatprep.subr.mxu0 0.0
    %603 = vmatpush1.msra.mxu0 %v568
    %604 = vmatprep.subr.mxu0 0.0
    %605 = vmatpush1.msra.mxu0 %v569
    %606 = vmatprep.subr.mxu0 0.0
    %607 = vmatpush1.msra.mxu0 %v570
    %608 = vmatprep.subr.mxu0 0.0
    %609 = vmatpush1.msra.mxu0 %v571
    %610 = vmatprep.subr.mxu0 0.0
    %611 = vmatpush1.msra.mxu0 %v572
    %612 = vmatprep.subr.mxu0 0.0
    %613 = vmatpush1.msra.mxu0 %v573
    %614 = vmatprep.subr.mxu0 0.0
    %615 = vmatpush1.msra.mxu0 %v574
    %616 = vmatprep.subr.mxu0 0.0
    %617 = vmatpush1.msra.mxu0 %v575
    %618 = vmatprep.subr.mxu0 0.0
    %619 = vmatpush1.msra.mxu0 %v576
    %620 = vmatprep.subr.mxu0 0.0
    %621 = vmatpush1.msra.mxu0 %v577
    %622 = vmatprep.subr.mxu0 0.0
    %623 = vmatpush1.msra.mxu0 %v578
    %624 = vmatprep.subr.mxu0 0.0
    %625 = vmatpush1.msra.mxu0 %v579
    %626 = vmatprep.subr.mxu0 0.0
    %627 = vmatpush1.msra.mxu0 %v580
    %628 = vmatprep.subr.mxu0 0.0
    %629 = vmatpush1.msra.mxu0 %v581
    %630 = vmatprep.subr.mxu0 0.0
    %631 = vmatpush1.msra.mxu0 %v582
    %632 = vmatprep.subr.mxu0 0.0
    %633 = vmatpush1.msra.mxu0 %v583
    %634 = vmatprep.subr.mxu0 0.0
    %635 = vmatpush1.msra.mxu0 %v584
    %636 = vmatprep.subr.mxu0 0.0
    %637 = vmatpush1.msra.mxu0 %v585
    %638 = vmatprep.subr.mxu0 0.0
    %639 = vmatpush1.msra.mxu0 %v586
    %640 = vmatprep.subr.mxu0 0.0
    %641 = vmatpush1.msra.mxu0 %v587
    %642 = vmatprep.subr.mxu0 0.0
    %643 = vmatpush1.msra.mxu0 %v588
    %644 = vmatprep.subr.mxu0 0.0
    %645 = vmatpush1.msra.mxu0 %v589
    %646 = vmatprep.subr.mxu0 0.0
    %647 = vmatpush1.msra.mxu0 %v590
    %648 = vmatprep.subr.mxu0 0.0
    %649 = vmatpush1.msra.mxu0 %v591
    %650 = vmatprep.subr.mxu0 0.0
    %651 = vmatpush1.msra.mxu0 %v592
    %652 = vmatprep.subr.mxu0 0.0
    %653 = vmatpush1.msra.mxu0 %v593
    %654 = vmatprep.subr.mxu0 0.0
    %655 = vmatpush1.msra.mxu0 %v594
    %656 = vmatprep.subr.mxu0 0.0
    %657 = vmatpush1.msra.mxu0 %v595
    %658 = vmatprep.subr.mxu0 0.0
    %659 = vmatpush1.msra.mxu0 %v596
    %660 = vmatprep.subr.mxu0 0.0
    %661 = vmatpush1.msra.mxu0 %v597
    %662 = vmatprep.mubr.f32.mxu0 %v555
    %663 = vmatmul.mubr.f32.gmra.mrb[0].mxu0 %v554
    %v664 = vpop.f32.mrb[0].mxu0
    %v665 = vadd.f32 0.0, %v664
    %v666 = vpop.f32.mrb[0].mxu0
    %667 = vmatprep.mubr.f32.mxu0 %v557
    %668 = vmatmul.mubr.f32.gmra.mrb[0].mxu0 %v556
    %v669 = vpop.f32.mrb[0].mxu0
    %v670 = vadd.f32 0.0, %v669
    %v671 = vpop.f32.mrb[0].mxu0
    %672 = vmatprep.mubr.f32.mxu0 %v559
    %673 = vmatmul.mubr.f32.gmra.mrb[0].mxu0 %v558
    %v674 = vpop.f32.mrb[0].mxu0
    %v675 = vadd.f32 0.0, %v674
    %v676 = vpop.f32.mrb[0].mxu0
    %677 = vmatprep.mubr.f32.mxu0 %v561
    %678 = vmatmul.mubr.f32.gmra.mrb[0].mxu0 %v560
    %v679 = vpop.f32.mrb[0].mxu0
    %v680 = vadd.f32 0.0, %v679
    %v681 = vpop.f32.mrb[0].mxu0
    %682 = vdwg.mxu0
    %v683 = vadd.f32 %v562, %v665
    %v684 = vadd.f32 %v563, %v670
    %v685 = vadd.f32 %v564, %v675
    %v686 = vadd.f32 %v565, %v680
    %687 = vst [vmem:[#allocation3] sm:$0xff] %v683
    %688 = vst [vmem:[#allocation3 + $0x8] sm:$0xff] %v684
    %689 = vst [vmem:[#allocation3 + $0x10] sm:$0xff] %v685
    %690 = vst [vmem:[#allocation3 + $0x18] sm:$0xff] %v686
    // Predicated region
    $region78: #{tpu_custom_call.1} parent=1 // pred_check
      %p691 = pneg %p145
    $region79: #{tpu_custom_call.1} parent=1 // pred_check_branch
      %693 = sbr.rel (%p691) target = $region81
    $region80: #{tpu_custom_call.1} parent=1 // pred_region
      %v694 = vld [vmem:[#allocation3] sm:$0xff]
      %v695 = vld [vmem:[#allocation3 + $0x8] sm:$0xff]
      %v696 = vld [vmem:[#allocation3 + $0x10] sm:$0xff]
      %v697 = vld [vmem:[#allocation3 + $0x18] sm:$0xff]
      %v698 = vld [vmem:[#allocation18] sm:$0x1]
      %v700 = vlaneseq
      %v701 = vshrl.u32 %v700, 7
      %v702 = vsub.s32 0, %v701
      %v703 = vrot.slane %v698, %v702
      %v705 = vadd.f32 %v694, %v703
      %v706 = vadd.f32 %v695, %v703
      %v707 = vadd.f32 %v696, %v703
      %v708 = vadd.f32 %v697, %v703
      %709 = vst [vmem:[#allocation19] sm:$0xff] %v705
      %710 = vst [vmem:[#allocation19 + $0x8] sm:$0xff] %v706
      %711 = vst [vmem:[#allocation19 + $0x10] sm:$0xff] %v707
      %712 = vst [vmem:[#allocation19 + $0x18] sm:$0xff] %v708
    $region81: #{tpu_custom_call.1} parent=1 // pred_fallthru
      _
    // Predicated region
    $region82: #{tpu_custom_call.1} parent=1 // pred_check
      _
    $region83: #{tpu_custom_call.1} parent=1 // pred_check_branch
      %714 = sbr.rel (0) target = $region85
    $region84: #{tpu_custom_call.1} parent=1 // pred_region
      %s716 = ssub.s32 512, 512
      %717 = vsyncadd [#allocation6], %s716
      %s718 = sshll.u32 [#allocation19], 4
      %s719 = int_to_ptr.vmem [resolvable:$true] %s718
      %724 = dma.vmem_to_hbm [thread:$0]  %s719, 512, %s9, [#allocation6], 128, 128, 8
    $region85: #{tpu_custom_call.1} parent=1 // pred_fallthru
      _
    // Predicated region
    $region86: #{tpu_custom_call.1} parent=1 // pred_check
      _
    $region87: #{tpu_custom_call.1} parent=1 // pred_check_branch
      %726 = sbr.rel (0) target = $region89
    $region88: #{tpu_custom_call.1} parent=1 // pred_region
      %727 = dma.done [#allocation6], 512
    $region89: #{tpu_custom_call.1} parent=1 // pred_fallthru
      _
    %728 = vsyncpa [#allocation5], 1
    %729 = vsyncpa [#allocation8], 1
    %730 = vsyncpa [#allocation11], 1
    %731 = vsyncpa [#allocation14], 1
    %732 = vsyncpa [#allocation17], 1
    %733 = vsyncpa [#allocation6], 1

</llo_original>
